<compile_context>
chip_gen: v7x
topology: tpu7x:2x2x1
jax: 0.10.0
libtpu: 0.0.40
codegen_flags: <defaults>
</compile_context>

<pallas_src>
import numpy as np
import jax
import jax.numpy as jnp
from jax.experimental import pallas as pl
from jax.experimental.pallas import tpu as pltpu

_LANE = 128
_PAD_LOGIT = -100.0  # sigmoid(-100) ~ 4e-44, log(1 + exp(-100)) ~ 4e-44  -> ~0


def _bce_dice_kernel(x_ref, t_ref, bce_out, inter_out, denom_out,
                     bce_acc, inter_acc, denom_acc):
    k = pl.program_id(1)

    @pl.when(k == 0)
    def _():
        bce_acc[...] = jnp.zeros_like(bce_acc)
        inter_acc[...] = jnp.zeros_like(inter_acc)
        denom_acc[...] = jnp.zeros_like(denom_acc)

    rows, tile = x_ref.shape
    nchunks = tile // _LANE

    # Register-resident partial sums (rows, 128); single VMEM RMW per step.
    # TODO(synk): for very large batch (rows >> 64) add a row-block grid axis
    # so these partial sums stay within the 64-vreg budget instead of spilling.
    bce_s = jnp.zeros((rows, _LANE), jnp.float32)
    int_s = jnp.zeros((rows, _LANE), jnp.float32)
    den_s = jnp.zeros((rows, _LANE), jnp.float32)
    for j in range(nchunks):              # static, 128-aligned lane slices
        sl = slice(j * _LANE, (j + 1) * _LANE)
        x = x_ref[:, sl].astype(jnp.float32)
        t = t_ref[:, sl].astype(jnp.float32)
        # Stable BCE-with-logits sharing e = exp(-|x|) with the sigmoid:
        #   bce     = max(x, 0) - x*t + log(1 + e)
        #   sigmoid = where(x >= 0, 1, e) / (1 + e)
        e = jnp.exp(-jnp.abs(x))
        one = 1.0 + e
        r = pl.reciprocal(one, approx=True)   # EUP slot
        r = r * (2.0 - one * r)               # one Newton step -> ~f32 exact
        p = jnp.where(x >= 0.0, 1.0, e) * r
        bce_s = bce_s + (jnp.maximum(x, 0.0) - x * t + jnp.log(one))
        int_s = int_s + p * t
        den_s = den_s + (p + t)
    bce_acc[...] += bce_s
    inter_acc[...] += int_s
    denom_acc[...] += den_s

    @pl.when(k == pl.num_programs(1) - 1)
    def _():
        # Single small cross-lane (XLU) reduction per partition.
        bce_out[...] = jnp.sum(bce_acc[...], axis=1, keepdims=True)
        inter_out[...] = jnp.sum(inter_acc[...], axis=1, keepdims=True)
        denom_out[...] = jnp.sum(denom_acc[...], axis=1, keepdims=True)


def _tpu_vmem_bytes():
    try:
        return int(pltpu.get_tpu_info().vmem_capacity_bytes)
    except Exception:
        return 64 * 1024 * 1024  # conservative (v7x-sized) fallback


def _tensorcore_count():
    """Best-effort TensorCores-per-kernel count (for megacore partitioning)."""
    try:
        info = pltpu.get_tpu_info()
        for attr in ("num_cores", "core_count", "tensorcore_count"):
            v = getattr(info, attr, None)
            if v:
                return int(v)
    except Exception:
        pass
    try:
        kind = jax.devices()[0].device_kind.lower()
        if "lite" in kind or "v5e" in kind or "v6e" in kind:
            return 1  # single-TensorCore generations
    except Exception:
        pass
    return 2  # megacore-capable default; only tiny overhead if wrong


def _round_up(v, m):
    return (v + m - 1) // m * m


def bce_dice_loss(logits, target, *, vmem_budget_bytes=None):
    """Pallas implementation of BCEDiceLoss.forward(logits, target)."""
    n = logits.shape[0]
    d = int(np.prod(logits.shape[1:]))
    rpp = 8                       # rows per sample (sublane-dense packing)
    rows = n * rpp
    in_itemsize = jnp.dtype(logits.dtype).itemsize

    # Generation-aware VMEM budget: ~half of physical, capped at 64 MiB scoped.
    vmem_limit = int(min(max(_tpu_vmem_bytes() // 2, 32 * 1024 * 1024),
                         64 * 1024 * 1024))
    if vmem_budget_bytes is None:
        vmem_budget_bytes = (vmem_limit * 3) // 4

    # Tile sizing: 2 inputs x 2 pipeline buffers per lane-column, plus the
    # fixed (rows, 128) f32 accumulators.
    fixed = rows * _LANE * 3 * 4
    bytes_per_col = rows * 4 * in_itemsize
    tile_cap = max(_LANE,
                   int(max(vmem_budget_bytes - fixed, 0) // bytes_per_col)
                   // _LANE * _LANE)
    tile_cap = min(tile_cap, 4096)      # bound in-kernel unroll (<= 32 chunks)

    ds_raw = -(-d // rpp)               # ceil(d / rpp) lane columns per row
    ds_al = _round_up(max(ds_raw, 1), _LANE)
    if ds_al <= tile_cap:
        tile = ds_al
    else:
        tile = _LANE
        t = tile_cap
        while t >= _LANE:               # largest 128-multiple dividing ds_al
            if ds_al % t == 0:
                tile = t
                break
            t -= _LANE
    steps_total = ds_al // tile

    # 2-way megacore partition of the reduction axis only when >1 TensorCore;
    # odd step counts are handled by padding one extra tile.
    if _tensorcore_count() >= 2 and steps_total >= 2:
        num_parts = 2
        steps = -(-steps_total // 2)
    else:
        num_parts, steps = 1, steps_total
    ds = num_parts * steps * tile       # lane columns per row after padding
    d_pad = rpp * ds

    x_flat = logits.reshape(n, d)
    t_flat = target.reshape(n, d)
    if d_pad != d:
        # Padded elements contribute ~0 to BCE, intersection and denominator.
        x_flat = jnp.pad(x_flat, ((0, 0), (0, d_pad - d)),
                         constant_values=_PAD_LOGIT)
        t_flat = jnp.pad(t_flat, ((0, 0), (0, d_pad - d)), constant_values=0)
    x2 = x_flat.reshape(rows, ds)       # native dtype; cast happens in-kernel
    t2 = t_flat.reshape(rows, ds)

    part_out = jax.ShapeDtypeStruct((num_parts, rows, 1), jnp.float32)
    cost = pl.CostEstimate(
        flops=12 * rows * ds,
        transcendentals=3 * rows * ds,
        bytes_accessed=2 * rows * ds * in_itemsize + 3 * num_parts * rows * 4,
    )

    bce_p, inter_p, denom_p = pl.pallas_call(
        _bce_dice_kernel,
        out_shape=(part_out, part_out, part_out),
        grid_spec=pltpu.PrefetchScalarGridSpec(
            num_scalar_prefetch=0,
            grid=(num_parts, steps),
            in_specs=[
                pl.BlockSpec((rows, tile), lambda p, k: (0, p * steps + k)),
                pl.BlockSpec((rows, tile), lambda p, k: (0, p * steps + k)),
            ],
            out_specs=[
                pl.BlockSpec((None, rows, 1), lambda p, k: (p, 0, 0)),
                pl.BlockSpec((None, rows, 1), lambda p, k: (p, 0, 0)),
                pl.BlockSpec((None, rows, 1), lambda p, k: (p, 0, 0)),
            ],
            scratch_shapes=[
                pltpu.VMEM((rows, _LANE), jnp.float32),  # bce lane acc
                pltpu.VMEM((rows, _LANE), jnp.float32),  # sigmoid*target acc
                pltpu.VMEM((rows, _LANE), jnp.float32),  # sigmoid+target acc
            ],
        ),
        compiler_params=pltpu.CompilerParams(
            dimension_semantics=("parallel", "arbitrary"),
            vmem_limit_bytes=vmem_limit,
        ),
        cost_estimate=cost,
    )(x2, t2)

    # Tiny final combine in plain JAX (a few dozen elements).
    smooth = jnp.float32(1e-5)
    bce_mean = jnp.sum(bce_p) / jnp.float32(n * d)           # true element count
    inter_s = jnp.sum(inter_p.reshape(num_parts, n, rpp), axis=(0, 2))
    denom_s = jnp.sum(denom_p.reshape(num_parts, n, rpp), axis=(0, 2))
    dice = (2.0 * inter_s + smooth) / (denom_s + smooth)
    return 0.5 * bce_mean + 1.0 - jnp.sum(dice) / jnp.float32(n)


def bce_dice_loss_ref(logits, target):
    """Pure-JAX reference matching the PyTorch module."""
    x = logits.astype(jnp.float32)
    t = target.astype(jnp.float32)
    bce = jnp.mean(jnp.maximum(x, 0.0) - x * t + jnp.log1p(jnp.exp(-jnp.abs(x))))
    smooth = 1e-5
    n = x.shape[0]
    p = jax.nn.sigmoid(x).reshape(n, -1)
    tt = t.reshape(n, -1)
    inter = jnp.sum(p * tt, axis=1)
    dice = (2.0 * inter + smooth) / (jnp.sum(p, axis=1) + jnp.sum(tt, axis=1) + smooth)
    dice = 1.0 - jnp.sum(dice) / n
    return 0.5 * bce + dice


if __name__ == "__main__":
    key = jax.random.PRNGKey(0)
    k1, k2, k3, k4 = jax.random.split(key, 4)

    # (N, C, H, W) like the PyTorch NCHW convention.
    x = jax.random.normal(k1, (2, 4, 16, 16), dtype=jnp.float32)
    t = jax.random.uniform(k2, (2, 4, 16, 16), dtype=jnp.float32)  # soft targets

    loss = jax.block_until_ready(jax.jit(bce_dice_loss)(x, t))
    ref = jax.block_until_ready(bce_dice_loss_ref(x, t))
    if not np.allclose(np.asarray(loss), np.asarray(ref), rtol=1e-5, atol=1e-5):
        raise AssertionError(f"mismatch: pallas={loss} ref={ref}")

    # Awkward shape exercising the padding path (D not divisible by 8 or 128).
    x2 = jax.random.normal(k3, (2, 3, 15, 17), dtype=jnp.float32)
    t2 = (jax.random.uniform(k4, (2, 3, 15, 17)) > 0.5).astype(jnp.float32)
    loss2 = jax.block_until_ready(jax.jit(bce_dice_loss)(x2, t2))
    ref2 = jax.block_until_ready(bce_dice_loss_ref(x2, t2))
    if not np.allclose(np.asarray(loss2), np.asarray(ref2), rtol=1e-5, atol=1e-5):
        raise AssertionError(f"mismatch (padded path): pallas={loss2} ref={ref2}")

    print("KERNEL_OK")
</pallas_src>

<mosaic_0001>
module attributes {stable_mosaic.version = 11 : i64} {
  func.func @_bce_dice_kernel(%arg0: i32, %arg1: i32, %arg2: memref<16x128xf32, #tpu.memory_space<vmem>>, %arg3: memref<16x128xf32, #tpu.memory_space<vmem>>, %arg4: memref<1x16x1xf32, #tpu.memory_space<vmem>>, %arg5: memref<1x16x1xf32, #tpu.memory_space<vmem>>, %arg6: memref<1x16x1xf32, #tpu.memory_space<vmem>>, %arg7: memref<16x128xf32, #tpu.memory_space<vmem>>, %arg8: memref<16x128xf32, #tpu.memory_space<vmem>>, %arg9: memref<16x128xf32, #tpu.memory_space<vmem>>) attributes {dimension_semantics = [#tpu.dimension_semantics<parallel>, #tpu.dimension_semantics<arbitrary>], iteration_bounds = array<i64: 1, 1>, scalar_prefetch = 0 : i64, scratch_operands = 3 : i64, tpu.core_type = #tpu.core_type<tc>, window_params = [{transform_indices = @transform_0, window_bounds = array<i64: 16, 128>}, {transform_indices = @transform_1, window_bounds = array<i64: 16, 128>}, {transform_indices = @transform_2, window_bounds = array<i64: 1, 16, 1>}, {transform_indices = @transform_3, window_bounds = array<i64: 1, 16, 1>}, {transform_indices = @transform_4, window_bounds = array<i64: 1, 16, 1>}]} {
    %c0_i32 = arith.constant 0 : i32
    %0 = arith.cmpi eq, %arg1, %c0_i32 : i32
    %1 = arith.extui %0 : i1 to i32
    %c0_i32_0 = arith.constant 0 : i32
    %2 = arith.cmpi ne, %1, %c0_i32_0 : i32
    scf.if %2 {
      %cst_26 = arith.constant 0.000000e+00 : f32
      %47 = vector.broadcast %cst_26 : f32 to vector<16x128xf32>
      %c0_27 = arith.constant 0 : index
      %c0_28 = arith.constant 0 : index
      %48 = vector.load %arg7[%c0_27, %c0_28] : memref<16x128xf32, #tpu.memory_space<vmem>>, vector<16x128xf32>
      tpu.vector_store %arg7[%c0_27, %c0_28], %47 {strides = array<i32>} : memref<16x128xf32, #tpu.memory_space<vmem>>, vector<16x128xf32>,
      %cst_29 = arith.constant 0.000000e+00 : f32
      %49 = vector.broadcast %cst_29 : f32 to vector<16x128xf32>
      %c0_30 = arith.constant 0 : index
      %c0_31 = arith.constant 0 : index
      %50 = vector.load %arg8[%c0_30, %c0_31] : memref<16x128xf32, #tpu.memory_space<vmem>>, vector<16x128xf32>
      tpu.vector_store %arg8[%c0_30, %c0_31], %49 {strides = array<i32>} : memref<16x128xf32, #tpu.memory_space<vmem>>, vector<16x128xf32>,
      %cst_32 = arith.constant 0.000000e+00 : f32
      %51 = vector.broadcast %cst_32 : f32 to vector<16x128xf32>
      %c0_33 = arith.constant 0 : index
      %c0_34 = arith.constant 0 : index
      %52 = vector.load %arg9[%c0_33, %c0_34] : memref<16x128xf32, #tpu.memory_space<vmem>>, vector<16x128xf32>
      tpu.vector_store %arg9[%c0_33, %c0_34], %51 {strides = array<i32>} : memref<16x128xf32, #tpu.memory_space<vmem>>, vector<16x128xf32>,
    } else {
    }
    %cst = arith.constant 0.000000e+00 : f32
    %3 = vector.broadcast %cst : f32 to vector<16x128xf32>
    %cst_1 = arith.constant 0.000000e+00 : f32
    %4 = vector.broadcast %cst_1 : f32 to vector<16x128xf32>
    %cst_2 = arith.constant 0.000000e+00 : f32
    %5 = vector.broadcast %cst_2 : f32 to vector<16x128xf32>
    %c0 = arith.constant 0 : index
    %c0_3 = arith.constant 0 : index
    %6 = vector.load %arg2[%c0, %c0_3] : memref<16x128xf32, #tpu.memory_space<vmem>>, vector<16x128xf32>
    %c0_4 = arith.constant 0 : index
    %c0_5 = arith.constant 0 : index
    %7 = vector.load %arg3[%c0_4, %c0_5] : memref<16x128xf32, #tpu.memory_space<vmem>>, vector<16x128xf32>
    %8 = math.absf %6 : vector<16x128xf32>
    %cst_6 = arith.constant 0.000000e+00 : f32
    %9 = vector.broadcast %cst_6 : f32 to vector<16x128xf32>
    %10 = arith.subf %9, %8 : vector<16x128xf32>
    %11 = math.exp %10 : vector<16x128xf32>
    %cst_7 = arith.constant 1.000000e+00 : f32
    %12 = vector.broadcast %cst_7 : f32 to vector<16x128xf32>
    %13 = arith.addf %12, %11 : vector<16x128xf32>
    %14 = tpu.reciprocal %13 {approx = true} : vector<16x128xf32> -> vector<16x128xf32>
    %15 = arith.mulf %13, %14 : vector<16x128xf32>
    %cst_8 = arith.constant 2.000000e+00 : f32
    %16 = vector.broadcast %cst_8 : f32 to vector<16x128xf32>
    %17 = arith.subf %16, %15 : vector<16x128xf32>
    %18 = arith.mulf %14, %17 : vector<16x128xf32>
    %cst_9 = arith.constant 0.000000e+00 : f32
    %19 = vector.broadcast %cst_9 : f32 to vector<16x128xf32>
    %20 = arith.cmpf oge, %6, %19 : vector<16x128xf32>
    %cst_10 = arith.constant 1.000000e+00 : f32
    %21 = vector.broadcast %cst_10 : f32 to vector<16x128xf32>
    %22 = arith.select %20, %21, %11 : vector<16x128xi1>, vector<16x128xf32>
    %23 = arith.mulf %22, %18 : vector<16x128xf32>
    %cst_11 = arith.constant 0.000000e+00 : f32
    %24 = vector.broadcast %cst_11 : f32 to vector<16x128xf32>
    %25 = arith.maximumf %6, %24 : vector<16x128xf32>
    %26 = arith.mulf %6, %7 : vector<16x128xf32>
    %27 = arith.subf %25, %26 : vector<16x128xf32>
    %28 = math.log %13 : vector<16x128xf32>
    %29 = arith.addf %27, %28 : vector<16x128xf32>
    %30 = arith.addf %3, %29 : vector<16x128xf32>
    %31 = arith.mulf %23, %7 : vector<16x128xf32>
    %32 = arith.addf %4, %31 : vector<16x128xf32>
    %33 = arith.addf %23, %7 : vector<16x128xf32>
    %34 = arith.addf %5, %33 : vector<16x128xf32>
    %c0_12 = arith.constant 0 : index
    %c0_13 = arith.constant 0 : index
    %35 = vector.load %arg7[%c0_12, %c0_13] : memref<16x128xf32, #tpu.memory_space<vmem>>, vector<16x128xf32>
    %36 = arith.addf %35, %30 : vector<16x128xf32>
    %c0_14 = arith.constant 0 : index
    %c0_15 = arith.constant 0 : index
    %37 = vector.load %arg7[%c0_14, %c0_15] : memref<16x128xf32, #tpu.memory_space<vmem>>, vector<16x128xf32>
    tpu.vector_store %arg7[%c0_14, %c0_15], %36 {strides = array<i32>} : memref<16x128xf32, #tpu.memory_space<vmem>>, vector<16x128xf32>,
    %c0_16 = arith.constant 0 : index
    %c0_17 = arith.constant 0 : index
    %38 = vector.load %arg8[%c0_16, %c0_17] : memref<16x128xf32, #tpu.memory_space<vmem>>, vector<16x128xf32>
    %39 = arith.addf %38, %32 : vector<16x128xf32>
    %c0_18 = arith.constant 0 : index
    %c0_19 = arith.constant 0 : index
    %40 = vector.load %arg8[%c0_18, %c0_19] : memref<16x128xf32, #tpu.memory_space<vmem>>, vector<16x128xf32>
    tpu.vector_store %arg8[%c0_18, %c0_19], %39 {strides = array<i32>} : memref<16x128xf32, #tpu.memory_space<vmem>>, vector<16x128xf32>,
    %c0_20 = arith.constant 0 : index
    %c0_21 = arith.constant 0 : index
    %41 = vector.load %arg9[%c0_20, %c0_21] : memref<16x128xf32, #tpu.memory_space<vmem>>, vector<16x128xf32>
    %42 = arith.addf %41, %34 : vector<16x128xf32>
    %c0_22 = arith.constant 0 : index
    %c0_23 = arith.constant 0 : index
    %43 = vector.load %arg9[%c0_22, %c0_23] : memref<16x128xf32, #tpu.memory_space<vmem>>, vector<16x128xf32>
    tpu.vector_store %arg9[%c0_22, %c0_23], %42 {strides = array<i32>} : memref<16x128xf32, #tpu.memory_space<vmem>>, vector<16x128xf32>,
    %c0_i32_24 = arith.constant 0 : i32
    %44 = arith.cmpi eq, %arg1, %c0_i32_24 : i32
    %45 = arith.extui %44 : i1 to i32
    %c0_i32_25 = arith.constant 0 : i32
    %46 = arith.cmpi ne, %45, %c0_i32_25 : i32
    scf.if %46 {
      %c0_26 = arith.constant 0 : index
      %c0_27 = arith.constant 0 : index
      %47 = vector.load %arg7[%c0_26, %c0_27] : memref<16x128xf32, #tpu.memory_space<vmem>>, vector<16x128xf32>
      %cst_28 = arith.constant dense<0.000000e+00> : vector<16xf32>
      %48 = vector.multi_reduction <add>, %47, %cst_28 [1] : vector<16x128xf32> to vector<16xf32>
      %49 = vector.shape_cast %48 : vector<16xf32> to vector<16x1xf32>
      %c0_29 = arith.constant 0 : index
      %c0_30 = arith.constant 0 : index
      %c0_31 = arith.constant 0 : index
      %50 = vector.load %arg4[%c0_29, %c0_30, %c0_31] : memref<1x16x1xf32, #tpu.memory_space<vmem>>, vector<1x16x1xf32>
      %51 = vector.shape_cast %50 : vector<1x16x1xf32> to vector<16x1xf32>
      %52 = vector.shape_cast %49 : vector<16x1xf32> to vector<1x16x1xf32>
      tpu.vector_store %arg4[%c0_29, %c0_30, %c0_31], %52 {strides = array<i32>} : memref<1x16x1xf32, #tpu.memory_space<vmem>>, vector<1x16x1xf32>,
      %c0_32 = arith.constant 0 : index
      %c0_33 = arith.constant 0 : index
      %53 = vector.load %arg8[%c0_32, %c0_33] : memref<16x128xf32, #tpu.memory_space<vmem>>, vector<16x128xf32>
      %cst_34 = arith.constant dense<0.000000e+00> : vector<16xf32>
      %54 = vector.multi_reduction <add>, %53, %cst_34 [1] : vector<16x128xf32> to vector<16xf32>
      %55 = vector.shape_cast %54 : vector<16xf32> to vector<16x1xf32>
      %c0_35 = arith.constant 0 : index
      %c0_36 = arith.constant 0 : index
      %c0_37 = arith.constant 0 : index
      %56 = vector.load %arg5[%c0_35, %c0_36, %c0_37] : memref<1x16x1xf32, #tpu.memory_space<vmem>>, vector<1x16x1xf32>
      %57 = vector.shape_cast %56 : vector<1x16x1xf32> to vector<16x1xf32>
      %58 = vector.shape_cast %55 : vector<16x1xf32> to vector<1x16x1xf32>
      tpu.vector_store %arg5[%c0_35, %c0_36, %c0_37], %58 {strides = array<i32>} : memref<1x16x1xf32, #tpu.memory_space<vmem>>, vector<1x16x1xf32>,
      %c0_38 = arith.constant 0 : index
      %c0_39 = arith.constant 0 : index
      %59 = vector.load %arg9[%c0_38, %c0_39] : memref<16x128xf32, #tpu.memory_space<vmem>>, vector<16x128xf32>
      %cst_40 = arith.constant dense<0.000000e+00> : vector<16xf32>
      %60 = vector.multi_reduction <add>, %59, %cst_40 [1] : vector<16x128xf32> to vector<16xf32>
      %61 = vector.shape_cast %60 : vector<16xf32> to vector<16x1xf32>
      %c0_41 = arith.constant 0 : index
      %c0_42 = arith.constant 0 : index
      %c0_43 = arith.constant 0 : index
      %62 = vector.load %arg6[%c0_41, %c0_42, %c0_43] : memref<1x16x1xf32, #tpu.memory_space<vmem>>, vector<1x16x1xf32>
      %63 = vector.shape_cast %62 : vector<1x16x1xf32> to vector<16x1xf32>
      %64 = vector.shape_cast %61 : vector<16x1xf32> to vector<1x16x1xf32>
      tpu.vector_store %arg6[%c0_41, %c0_42, %c0_43], %64 {strides = array<i32>} : memref<1x16x1xf32, #tpu.memory_space<vmem>>, vector<1x16x1xf32>,
    } else {
    }
    return
  }
  func.func @transform_0(%arg0: i32, %arg1: i32) -> (i32, i32) {
    %c1_i32 = arith.constant 1 : i32
    %0 = arith.muli %arg0, %c1_i32 : i32
    %1 = arith.addi %0, %arg1 : i32
    %c0_i32 = arith.constant 0 : i32
    %c0_i32_0 = arith.constant 0 : i32
    return %c0_i32, %1 : i32, i32
  }
  func.func @transform_1(%arg0: i32, %arg1: i32) -> (i32, i32) {
    %c1_i32 = arith.constant 1 : i32
    %0 = arith.muli %arg0, %c1_i32 : i32
    %1 = arith.addi %0, %arg1 : i32
    %c0_i32 = arith.constant 0 : i32
    %c0_i32_0 = arith.constant 0 : i32
    return %c0_i32, %1 : i32, i32
  }
  func.func @transform_2(%arg0: i32, %arg1: i32) -> (i32, i32, i32) {
    %c0_i32 = arith.constant 0 : i32
    %c0_i32_0 = arith.constant 0 : i32
    %c0_i32_1 = arith.constant 0 : i32
    return %arg0, %c0_i32, %c0_i32_0 : i32, i32, i32
  }
  func.func @transform_3(%arg0: i32, %arg1: i32) -> (i32, i32, i32) {
    %c0_i32 = arith.constant 0 : i32
    %c0_i32_0 = arith.constant 0 : i32
    %c0_i32_1 = arith.constant 0 : i32
    return %arg0, %c0_i32, %c0_i32_0 : i32, i32, i32
  }
  func.func @transform_4(%arg0: i32, %arg1: i32) -> (i32, i32, i32) {
    %c0_i32 = arith.constant 0 : i32
    %c0_i32_0 = arith.constant 0 : i32
    %c0_i32_1 = arith.constant 0 : i32
    return %arg0, %c0_i32, %c0_i32_0 : i32, i32, i32
  }
}

</mosaic_0001>

<llo_original>
// kernel: bce_dice_loss.1
$region0: #{bce_dice_loss.1}
  #allocation0 [shape = 'u32[]', space=smem, size = 0x4, offset = 0x4, fixed_abs, tag = 'smem constant byte address 0x4 - core index']
  #allocation1 [shape = 'u32[144,128]{1,0:T(1,128)}', space=vmem, size = 0x12000, scoped, tag = 'internal scratch']
  #allocation2 [shape = 'f32[16,128]{1,0:T(8,128)}', space=vmem, size = 0x2000, scoped, tag = 'scratch operand']
  #allocation3 [shape = 'f32[16,128]{1,0:T(8,128)}', space=vmem, size = 0x2000, scoped, tag = 'scratch operand']
  #allocation4 [shape = 'f32[16,128]{1,0:T(8,128)}', space=vmem, size = 0x2000, scoped, tag = 'scratch operand']
  %s0 = inlined_call_operand.vmem [shape: f32[16,128], index: 0, kind: input, shape index: {}]
  %s1 = inlined_call_operand.vmem [shape: f32[16,128], index: 1, kind: input, shape index: {}]
  %s2 = inlined_call_operand.vmem [shape: f32[1,16,1], index: 2, kind: output, shape index: {0}]
  %s3 = inlined_call_operand.vmem [shape: f32[1,16,1], index: 3, kind: output, shape index: {1}]
  %s4 = inlined_call_operand.vmem [shape: f32[1,16,1], index: 4, kind: output, shape index: {2}]
  %5 = xla_tuple %s2, %s3, %s4
  %s6 = sld [smem:[#allocation0]]
  $region42: #{bce_dice_loss.1} parent=0
    _
  %s8 = ssub.s32 1, %s6
  %s9 = scalar_select 0, %s8, %s6
  // Predicated region
  $region2: #{bce_dice_loss.1} parent=0 // pred_check
    _
  $region3: #{bce_dice_loss.1} parent=0 // pred_check_branch
    %11 = sbr.rel (0) target = $region5
  $region4: #{bce_dice_loss.1} parent=0 // pred_region
    %s12 = sadd.s32 0, 0
    %p13 = scmp.lt.s32.totalorder %s12, 0
    %s14 = scalar_select %p13, %s12, 0
    %s15 = smul.addr %s14, 8
    %s16 = scalar_lea.vmem %s0, %s15
    %s17 = sadd.s32 0, 0
  $region5: #{bce_dice_loss.1} parent=0 // pred_fallthru
    _
  // Predicated region
  $region6: #{bce_dice_loss.1} parent=0 // pred_check
    _
  $region7: #{bce_dice_loss.1} parent=0 // pred_check_branch
    %19 = sbr.rel (0) target = $region9
  $region8: #{bce_dice_loss.1} parent=0 // pred_region
    %s20 = sadd.s32 0, 0
    %p21 = scmp.lt.s32.totalorder %s20, 0
    %s22 = scalar_select %p21, %s20, 0
    %s23 = smul.addr %s22, 8
    %s24 = scalar_lea.vmem %s1, %s23
    %s25 = sadd.s32 0, 0
  $region9: #{bce_dice_loss.1} parent=0 // pred_fallthru
    _
  %s26 = sadd.s32 0, 0
  %p27 = scmp.lt.s32.totalorder %s26, 0
  %s28 = scalar_select %p27, %s26, 0
  %s29 = smul.addr %s28, 8
  %s30 = scalar_lea.vmem %s0, %s29
  %s31 = sadd.s32 0, 0
  %p32 = scmp.lt.s32.totalorder %s31, 0
  %s33 = scalar_select %p32, %s31, 0
  %s34 = smul.addr %s33, 8
  %s35 = scalar_lea.vmem %s1, %s34
  %s36 = sadd.s32 0, 0
  %p37 = scmp.lt.s32.totalorder %s36, 0
  %s38 = scalar_select %p37, %s36, 0
  %s39 = smul.addr %s38, 8
  %s40 = scalar_lea.vmem %s0, %s39
  %s41 = sadd.s32 0, 0
  %s42 = sadd.s32 0, 0
  %p43 = scmp.lt.s32.totalorder %s42, 0
  %s44 = scalar_select %p43, %s42, 0
  %s45 = smul.addr %s44, 8
  %s46 = scalar_lea.vmem %s1, %s45
  %s47 = sadd.s32 0, 0
  %p48 = scmp.eq.s32.totalorder 0, 0
  // Predicated region
  $region10: #{bce_dice_loss.1} parent=0 // pred_check
    %p49 = pneg %p48
  $region11: #{bce_dice_loss.1} parent=0 // pred_check_branch
    %51 = sbr.rel (%p49) target = $region13
  $region12: #{bce_dice_loss.1} parent=0 // pred_region
    %52 = vst [vmem:[#allocation2] sm:$0xff] 0.0
    %53 = vst [vmem:[#allocation2 + $0x8] sm:$0xff] 0.0
    %54 = vst [vmem:[#allocation3] sm:$0xff] 0.0
    %55 = vst [vmem:[#allocation3 + $0x8] sm:$0xff] 0.0
    %56 = vst [vmem:[#allocation4] sm:$0xff] 0.0
    %57 = vst [vmem:[#allocation4 + $0x8] sm:$0xff] 0.0
  $region13: #{bce_dice_loss.1} parent=0 // pred_fallthru
    _
  %v58 = vld [vmem:[%s40] sm:$0xff]
  %v59 = vld [vmem:[%s40 + $0x8] sm:$0xff]
  %v60 = vld [vmem:[%s46] sm:$0xff]
  %v61 = vld [vmem:[%s46 + $0x8] sm:$0xff]
  %v62 = vand.u32 2147483647, %v58
  %v63 = vand.u32 2147483647, %v59
  %v64 = vsub.f32 0.0, %v62
  %v65 = vsub.f32 0.0, %v63
  %v66 = vmul.f32 %v64, 1.442695
  %v67 = vpow.pop %v66
  %v68 = vmul.f32 %v65, 1.442695
  %v69 = vpow.pop %v68
  %v70 = vadd.f32 %v67, 1.0
  %v71 = vadd.f32 %v69, 1.0
  %v72 = vrcp.pop %v70
  %v73 = vrcp.pop %v71
  %v74 = vmul.f32 %v70, %v72
  %v75 = vmul.f32 %v71, %v73
  %v76 = vsub.f32 2.0, %v74
  %v77 = vsub.f32 2.0, %v75
  %v78 = vmul.f32 %v72, %v76
  %v79 = vmul.f32 %v73, %v77
  %vm80 = vcmp.ge.f32.partialorder %v58, 0.0
  %vm81 = vcmp.ge.f32.partialorder %v59, 0.0
  %v82 = vsel %vm80, 1.0, %v67
  %v83 = vsel %vm81, 1.0, %v69
  %v84 = vmul.f32 %v82, %v78
  %v85 = vmul.f32 %v83, %v79
  %v86 = vmax.f32 %v58, 0.0
  %v87 = vmax.f32 %v59, 0.0
  %v88 = vmul.f32 %v58, %v60
  %v89 = vmul.f32 %v59, %v61
  %v90 = vsub.f32 %v86, %v88
  %v91 = vsub.f32 %v87, %v89
  %v92 = vlog2.pop %v70
  %v93 = vmul.f32 %v92, 0.6931472
  %v94 = vlog2.pop %v71
  %v95 = vmul.f32 %v94, 0.6931472
  %v96 = vadd.f32 %v90, %v93
  %v97 = vadd.f32 %v91, %v95
  %v98 = vadd.f32 %v96, 0.0
  %v99 = vadd.f32 %v97, 0.0
  %v100 = vmul.f32 %v84, %v60
  %v101 = vmul.f32 %v85, %v61
  %v102 = vadd.f32 %v100, 0.0
  %v103 = vadd.f32 %v101, 0.0
  %v104 = vadd.f32 %v84, %v60
  %v105 = vadd.f32 %v85, %v61
  %v106 = vadd.f32 %v104, 0.0
  %v107 = vadd.f32 %v105, 0.0
  %v108 = vld [vmem:[#allocation2] sm:$0xff]
  %v109 = vld [vmem:[#allocation2 + $0x8] sm:$0xff]
  %v110 = vadd.f32 %v108, %v98
  %v111 = vadd.f32 %v109, %v99
  %112 = vst [vmem:[#allocation2] sm:$0xff] %v110
  %113 = vst [vmem:[#allocation2 + $0x8] sm:$0xff] %v111
  %v114 = vld [vmem:[#allocation3] sm:$0xff]
  %v115 = vld [vmem:[#allocation3 + $0x8] sm:$0xff]
  %v116 = vadd.f32 %v114, %v102
  %v117 = vadd.f32 %v115, %v103
  %118 = vst [vmem:[#allocation3] sm:$0xff] %v116
  %119 = vst [vmem:[#allocation3 + $0x8] sm:$0xff] %v117
  %v120 = vld [vmem:[#allocation4] sm:$0xff]
  %v121 = vld [vmem:[#allocation4 + $0x8] sm:$0xff]
  %v122 = vadd.f32 %v120, %v106
  %v123 = vadd.f32 %v121, %v107
  %124 = vst [vmem:[#allocation4] sm:$0xff] %v122
  %125 = vst [vmem:[#allocation4 + $0x8] sm:$0xff] %v123
  // Predicated region
  $region14: #{bce_dice_loss.1} parent=0 // pred_check
    %p126 = pneg %p48
  $region15: #{bce_dice_loss.1} parent=0 // pred_check_branch
    %128 = sbr.rel (%p126) target = $region17
  $region16: #{bce_dice_loss.1} parent=0 // pred_region
    %v129 = vld [vmem:[#allocation2] sm:$0xff]
    %v130 = vld [vmem:[#allocation2 + $0x8] sm:$0xff]
    %131 = vadd.xlane.f32.xlu0 %v129
    %v132 = vpop.xlane.xlu0 %131
    %133 = vadd.xlane.f32.xlu0 %v130
    %v134 = vpop.xlane.xlu0 %133
    %vm135 = vcmask 7168
    %136 = vst.msk [vmem:[%s2] sm:$0xff] %vm135, %v132
    %137 = vst.msk [vmem:[%s2 + $0x8] sm:$0xff] %vm135, %v134
    %v138 = vld [vmem:[#allocation3] sm:$0xff]
    %v139 = vld [vmem:[#allocation3 + $0x8] sm:$0xff]
    %140 = vadd.xlane.f32.xlu0 %v138
    %v141 = vpop.xlane.xlu0 %140
    %142 = vadd.xlane.f32.xlu0 %v139
    %v143 = vpop.xlane.xlu0 %142
    %144 = vst.msk [vmem:[%s3] sm:$0xff] %vm135, %v141
    %145 = vst.msk [vmem:[%s3 + $0x8] sm:$0xff] %vm135, %v143
    %v146 = vld [vmem:[#allocation4] sm:$0xff]
    %v147 = vld [vmem:[#allocation4 + $0x8] sm:$0xff]
    %148 = vadd.xlane.f32.xlu0 %v146
    %v149 = vpop.xlane.xlu0 %148
    %150 = vadd.xlane.f32.xlu0 %v147
    %v151 = vpop.xlane.xlu0 %150
    %152 = vst.msk [vmem:[%s4] sm:$0xff] %vm135, %v149
    %153 = vst.msk [vmem:[%s4 + $0x8] sm:$0xff] %vm135, %v151
  $region17: #{bce_dice_loss.1} parent=0 // pred_fallthru
    _
  // Predicated region
  $region18: #{bce_dice_loss.1} parent=0 // pred_check
    _
  $region19: #{bce_dice_loss.1} parent=0 // pred_check_branch
    %155 = sbr.rel (0) target = $region21
  $region20: #{bce_dice_loss.1} parent=0 // pred_region
    _
  $region21: #{bce_dice_loss.1} parent=0 // pred_fallthru
    _
  // Predicated region
  $region22: #{bce_dice_loss.1} parent=0 // pred_check
    _
  $region23: #{bce_dice_loss.1} parent=0 // pred_check_branch
    %157 = sbr.rel (0) target = $region25
  $region24: #{bce_dice_loss.1} parent=0 // pred_region
    _
  $region25: #{bce_dice_loss.1} parent=0 // pred_fallthru
    _
  // Predicated region
  $region26: #{bce_dice_loss.1} parent=0 // pred_check
    _
  $region27: #{bce_dice_loss.1} parent=0 // pred_check_branch
    %159 = sbr.rel (0) target = $region29
  $region28: #{bce_dice_loss.1} parent=0 // pred_region
    _
  $region29: #{bce_dice_loss.1} parent=0 // pred_fallthru
    _
  // Predicated region
  $region30: #{bce_dice_loss.1} parent=0 // pred_check
    _
  $region31: #{bce_dice_loss.1} parent=0 // pred_check_branch
    %161 = sbr.rel (0) target = $region33
  $region32: #{bce_dice_loss.1} parent=0 // pred_region
    _
  $region33: #{bce_dice_loss.1} parent=0 // pred_fallthru
    _
  // Predicated region
  $region34: #{bce_dice_loss.1} parent=0 // pred_check
    _
  $region35: #{bce_dice_loss.1} parent=0 // pred_check_branch
    %163 = sbr.rel (0) target = $region37
  $region36: #{bce_dice_loss.1} parent=0 // pred_region
    _
  $region37: #{bce_dice_loss.1} parent=0 // pred_fallthru
    _
  // Predicated region
  $region38: #{bce_dice_loss.1} parent=0 // pred_check
    _
  $region39: #{bce_dice_loss.1} parent=0 // pred_check_branch
    %165 = sbr.rel (0) target = $region41
  $region40: #{bce_dice_loss.1} parent=0 // pred_region
    _
  $region41: #{bce_dice_loss.1} parent=0 // pred_fallthru
    _

</llo_original>
